<compile_context>
chip_gen: v5e
topology: v5e:2x2
jax: 0.10.0
libtpu: 0.0.40
codegen_flags: <defaults>
</compile_context>

<pallas_src>
import functools

import jax
import jax.numpy as jnp
from jax.experimental import pallas as pl
from jax.experimental.pallas import tpu as pltpu


def _pos_emb_kernel(off_ref, w_hbm_ref, o_ref, copy_sem, *, seq_len, num_emb):
    # off_ref:   SMEM scalar prefetch, shape (1,), int32  (the `offset` arg)
    # w_hbm_ref: (num_embeddings, dims) embedding table, left in HBM (pl.ANY)
    # o_ref:     (seq_len, dims) output block in VMEM
    # copy_sem:  DMA completion semaphore
    off = off_ref[0]

    # Clamp so the DMA can never read out of bounds.
    # TODO(synk): PyTorch nn.Embedding raises on out-of-range positions; here we clamp.
    max_off = max(num_emb - seq_len, 0)
    off = jnp.clip(off, 0, max_off)

    # Pure bandwidth-bound copy: weight[off : off + seq_len, :] -> output block.
    cp = pltpu.make_async_copy(
        w_hbm_ref.at[pl.ds(off, seq_len), :],
        o_ref,
        copy_sem,
    )
    cp.start()
    cp.wait()


def positional_embedding(x, weight, offset=0):
    """Equivalent of PositionalEmbedding.forward.

    x:      integer array of shape (..., seq_len); only its shape is used.
    weight: (num_embeddings, dims) embedding table.
    returns array of shape (..., seq_len, dims), dtype == weight.dtype.
    """
    seq_len = x.shape[-1]
    num_emb, dims = weight.shape
    lead_shape = x.shape[:-1]

    offset_arr = jnp.asarray([offset], dtype=jnp.int32)
    kernel = functools.partial(_pos_emb_kernel, seq_len=seq_len, num_emb=num_emb)

    emb = pl.pallas_call(
        kernel,
        out_shape=jax.ShapeDtypeStruct((seq_len, dims), weight.dtype),
        grid_spec=pltpu.PrefetchScalarGridSpec(
            num_scalar_prefetch=1,
            grid=(1,),
            in_specs=[
                # Keep the full table in HBM; the kernel DMAs only the rows it needs.
                pl.BlockSpec(memory_space=pl.ANY),
            ],
            out_specs=pl.BlockSpec((seq_len, dims), lambda i, off: (0, 0)),
            scratch_shapes=[pltpu.SemaphoreType.DMA],
        ),
        compiler_params=pltpu.CompilerParams(
            dimension_semantics=("arbitrary",),
        ),
    )(offset_arr, weight)

    # Same positional embedding for every leading (batch) index -> free broadcast.
    return jnp.broadcast_to(emb, lead_shape + (seq_len, dims))


if __name__ == "__main__":
    key = jax.random.PRNGKey(0)
    k_w, k_x = jax.random.split(key)

    # Module config: seq_len (table size) = 16, dims = 32
    max_seq_len, dims = 16, 32
    # reset_parameters(): normal(std=0.02)
    weight = (0.02 * jax.random.normal(k_w, (max_seq_len, dims))).astype(jnp.float32)

    # Input: (batch=2, seq_len=8) long tokens (values unused by the forward)
    x = jax.random.randint(k_x, (2, 8), 0, max_seq_len, dtype=jnp.int32)
    offset = 2

    out = positional_embedding(x, weight, offset=offset)
    out = jax.block_until_ready(out)

    # Reference check in plain JAX: out[..., s, :] == weight[offset + s]
    pos = jnp.arange(offset, offset + x.shape[-1])
    ref = jnp.broadcast_to(weight[pos], x.shape + (dims,))
    assert out.shape == x.shape + (dims,)
    assert out.dtype == weight.dtype
    assert jnp.allclose(out, ref, atol=1e-6), "mismatch vs reference"

    print("KERNEL_OK")
</pallas_src>

<mosaic_0001>
module attributes {stable_mosaic.version = 11 : i64} {
  func.func @_pos_emb_kernel(%arg0: i32, %arg1: memref<1xi32, #tpu.memory_space<smem>>, %arg2: memref<16x32xf32, #tpu.memory_space<any>>, %arg3: memref<8x32xf32, #tpu.memory_space<vmem>>, %arg4: memref<!tpu.dma_semaphore, #tpu.memory_space<semaphore_mem>>) attributes {dimension_semantics = [#tpu.dimension_semantics<arbitrary>], iteration_bounds = array<i64: 1>, scalar_prefetch = 1 : i64, scratch_operands = 1 : i64, tpu.core_type = #tpu.core_type<tc>, window_params = [{}, {pipeline_mode = #tpu.pipeline_mode<synchronous>, transform_indices = @transform_1, window_bounds = array<i64: 8, 32>}]} {
    %c0 = arith.constant 0 : index
    %0 = memref.load %arg1[%c0] : memref<1xi32, #tpu.memory_space<smem>>
    %c0_i32 = arith.constant 0 : i32
    %c8_i32 = arith.constant 8 : i32
    %1 = arith.maxsi %c0_i32, %0 : i32
    %2 = arith.minsi %c8_i32, %1 : i32
    %c0_i32_0 = arith.constant 0 : i32
    %3 = tpu.memref_slice %arg2[%2, %c0_i32_0] : memref<16x32xf32, #tpu.memory_space<any>> -> memref<8x32xf32, #tpu.memory_space<any>>
    tpu.enqueue_dma source(%3 : memref<8x32xf32, #tpu.memory_space<any>>) target(%arg3 : memref<8x32xf32, #tpu.memory_space<vmem>>) target_semaphore(%arg4 : memref<!tpu.dma_semaphore, #tpu.memory_space<semaphore_mem>>)
    %c0_i32_1 = arith.constant 0 : i32
    %4 = tpu.memref_slice %arg2[%2, %c0_i32_1] : memref<16x32xf32, #tpu.memory_space<any>> -> memref<8x32xf32, #tpu.memory_space<any>>
    tpu.wait_dma2 semaphore(%arg4 : memref<!tpu.dma_semaphore, #tpu.memory_space<semaphore_mem>>) src(%4 : memref<8x32xf32, #tpu.memory_space<any>>) dst(%arg3 : memref<8x32xf32, #tpu.memory_space<vmem>>)
    return
  }
  func.func @transform_1(%arg0: i32, %arg1: memref<1xi32, #tpu.memory_space<smem>>) -> (i32, i32) {
    %c0_i32 = arith.constant 0 : i32
    %c0_i32_0 = arith.constant 0 : i32
    %c0_i32_1 = arith.constant 0 : i32
    return %c0_i32, %c0_i32_0 : i32, i32
  }
}

</mosaic_0001>

<llo_original>
// kernel: tpu_custom_call.1
$region0: #{tpu_custom_call.1}
  #allocation0 [shape = 'u32[]', space=smem, size = 0x4, offset = 0x4, fixed_abs, tag = 'smem constant byte address 0x4 - core index']
  #allocation1 [shape = 'u32[72,128]{1,0:T(1,128)}', space=vmem, size = 0x9000, scoped, tag = 'internal scratch']
  #allocation2 [shape = 's32[1]{0}', space=sflag, size = 0x4, scoped, tag = 'scratch operand']
  #allocation3 [shape = 's32[1]{0}', space=sflag, size = 0x4, scoped, tag = 'scoped memory for tpu_custom_call.1']
  #allocation4 [shape = 's32[1]{0:T(128)S(6)}', space=smem, size = 0x200, scoped, tag = 'prefetched SMEM operand 0']
  #allocation7 [shape = 's32[]', space=sflag, size = 0x4, offset = 0, fixed_abs, tag = 'sflag constant byte address 0x0 - dummy sync flag']
  #allocation8 [shape = 's32[]', space=sflag, size = 0x4, offset = 0, fixed_abs, tag = 'sflag constant byte address 0x0 - dummy sync flag']
  #allocation9 [shape = 'u32[]', space=smem, size = 0x4, offset = 0x44, fixed_abs, tag = 'smem constant byte address 0x44 - assertion arg 0']
  #allocation10 [shape = 'u32[]', space=smem, size = 0x4, offset = 0x48, fixed_abs, tag = 'smem constant byte address 0x48 - assertion arg 1']
  %s0 = inlined_call_operand.<no memory space> [shape: s32[1], index: 0, kind: input, shape index: {}]
  %s1 = inlined_call_operand.hbm [shape: f32[16,32], index: 1, kind: input, shape index: {}]
  %s2 = inlined_call_operand.hbm [shape: f32[8,32], index: 2, kind: output, shape index: {}]
  %s3 = sld [smem:[#allocation0]]
  $region14: #{tpu_custom_call.1} parent=0
    _
  %s5 = ssub.s32 1, %s3
  %s6 = scalar_select 0, %s5, %s3
  %7 = sst [smem:[#allocation4]] %s0
  $region1: #{tpu_custom_call.1} parent=0
    #allocation5 [shape = 'u8[4096]{0}', space=vmem, size = 0x1000, scoped, tag = 'output window, operand 0, single buffered']
    #allocation6 [shape = 's32[1]{0}', space=sflag, size = 0x4, scoped, tag = 'scoped memory for tpu_custom_call.1']
    %8 = vsyncpa [#allocation6], 0
    %s9 = sld [smem:[#allocation4]]
    %p10 = scmp.gt.s32.totalorder %s9, 0
    %s11 = scalar_select %p10, %s9, 0
    %p12 = scmp.lt.s32.totalorder %s11, 8
    %s13 = scalar_select %p12, %s11, 8
    %s14 = scalar_lea.hbm %s1, %s13
    // Predicated region
    $region2: #{tpu_custom_call.1} parent=1 // pred_check
      _
    $region3: #{tpu_custom_call.1} parent=1 // pred_check_branch
      %16 = sbr.rel target = $region5
    $region4: #{tpu_custom_call.1} parent=1 // pred_region
      %17 = sst [smem:[#allocation9]] [#allocation8]
      %18 = sst [smem:[#allocation10]] [#allocation7]
    $region5: #{tpu_custom_call.1} parent=1 // pred_fallthru
      _
    %20 = shalt.err (0)
    %s22 = sshll.u32 %s14, 4
    %s23 = int_to_ptr.hbm [resolvable:$true] %s22
    %s24 = sshll.u32 [#allocation5], 4
    %s25 = int_to_ptr.vmem [resolvable:$true] %s24
    %27 = dma.hbm_to_vmem [thread:$0]  %s23, 128, %s25, [#allocation2]
    %s28 = smul.u32 8, 1
    %s29 = sshll.u32 %s28, 4
    %30 = dma.done [#allocation2], %s29
    // Predicated region
    $region6: #{tpu_custom_call.1} parent=1 // pred_check
      _
    $region7: #{tpu_custom_call.1} parent=1 // pred_check_branch
      %32 = sbr.rel (0) target = $region9
    $region8: #{tpu_custom_call.1} parent=1 // pred_region
      %34 = vsyncadd [#allocation6], 0
      %s36 = sshll.u32 [#allocation5], 4
      %s37 = int_to_ptr.vmem [resolvable:$true] %s36
      %s38 = sshll.u32 %s2, 4
      %s39 = int_to_ptr.hbm [resolvable:$true] %s38
      %41 = dma.vmem_to_hbm [thread:$0]  %s37, 128, %s39, [#allocation6]
    $region9: #{tpu_custom_call.1} parent=1 // pred_fallthru
      _
    // Predicated region
    $region10: #{tpu_custom_call.1} parent=1 // pred_check
      _
    $region11: #{tpu_custom_call.1} parent=1 // pred_check_branch
      %43 = sbr.rel (0) target = $region13
    $region12: #{tpu_custom_call.1} parent=1 // pred_region
      %45 = dma.done [#allocation6], 128
    $region13: #{tpu_custom_call.1} parent=1 // pred_fallthru
      _
    %46 = vsyncpa [#allocation6], 1
  %47 = vsyncmov [#allocation2]
  %s48 = vpop.sfrf %47
  %p49 = scmp.eq.s32.totalorder %s48, 0
  %p50 = pneg %p49
  %52 = shalt.err (%p50)

</llo_original>
